<compile_context>
chip_gen: v6e
topology: v6e:2x2x1
jax: 0.10.0
libtpu: 0.0.40
codegen_flags: <defaults>
</compile_context>

<pallas_src>
import functools
import math

import jax
import jax.numpy as jnp
from jax.experimental import pallas as pl
from jax.experimental.pallas import tpu as pltpu

EXPANSION = 4
BN_EPS = 1e-5
LANE = 128
SUB = 16  # bf16 sublane packing (16 rows per vreg)


# ----------------------------------------------------------------------------
# Small helpers
# ----------------------------------------------------------------------------
def _rup(x, m):
    return ((x + m - 1) // m) * m


def _tpu_vmem_capacity():
    try:
        return int(pltpu.get_tpu_info().vmem_capacity_bytes)
    except Exception:
        return None


_VMEM_CAP = _tpu_vmem_capacity()
# v7x exposes 64 MiB VMEM per TensorCore; v5e/v6e (and the no-query fallback) 128 MiB.
_IS_SMALL_VMEM = _VMEM_CAP is not None and _VMEM_CAP <= 64 * 1024 * 1024
_VMEM_LIMIT = min(((_VMEM_CAP or 128 * 1024 * 1024) * 3) // 4, 100 * 1024 * 1024)


def _cparams(n_axes):
    return pltpu.CompilerParams(
        dimension_semantics=("parallel",) * n_axes,
        vmem_limit_bytes=_VMEM_LIMIT,
    )


def _pick_tn(cout):
    """cout tile (cout is always a multiple of 128 here).  Only force >=2 tiles on
    64-MiB-VMEM parts (v7x, 2 TensorCores); single-TC v5e/v6e keep the big tile."""
    if cout <= 128:
        return cout
    tn = min(512, cout)
    if _IS_SMALL_VMEM and cout // tn < 2:
        tn = max(128, cout // 2)
    assert cout % tn == 0
    return tn


# ----------------------------------------------------------------------------
# Pallas kernels
# ----------------------------------------------------------------------------
def _mm_kernel(*refs, relu, has_res):
    """(X @ W) + bias [+ residual] [-> ReLU].  Single-shot K (no reduction grid axis)."""
    if has_res:
        x_ref, w_ref, b_ref, r_ref, o_ref = refs
    else:
        x_ref, w_ref, b_ref, o_ref = refs
        r_ref = None
    y = jnp.dot(x_ref[...], w_ref[...], preferred_element_type=jnp.float32)
    y = y + b_ref[...]
    if has_res:
        y = y + r_ref[...].astype(jnp.float32)
    if relu:
        y = jnp.maximum(y, 0.0)
    o_ref[...] = y.astype(o_ref.dtype)


def _conv_tap_kernel(*refs, n_planes, taps, cin, ld, mo, relu):
    """Direct kxk conv over flattened bf16 stride-parity planes.

    taps: static list of (plane_idx, row_offset, col_shift, weight_row_offset).
    row_offset is a multiple of V (V is a multiple of 16) -> sublane-aligned bf16
    window; the small col_shift is applied on the f32 MXU partial, so no unaligned
    packed slices and no casts are needed.
    """
    plane_refs = refs[:n_planes]
    w_ref, b_ref, o_ref = refs[n_planes:]
    acc = None
    for (pi, rbase, cshift, wrow) in taps:
        xt = plane_refs[pi][0, rbase:rbase + ld, :]                 # bf16, aligned
        part = jnp.dot(xt, w_ref[wrow:wrow + cin, :],
                       preferred_element_type=jnp.float32)          # (ld, tn) f32
        part = part[cshift:cshift + mo, :]                          # f32 shift
        acc = part if acc is None else acc + part
    y = acc + b_ref[...]
    if relu:
        y = jnp.maximum(y, 0.0)
    o_ref[0] = y.astype(o_ref.dtype)


def _maxpool_kernel(p00_ref, p01_ref, p10_ref, p11_ref, o_ref):
    """3x3 / stride-2 / pad-1 max pool from 4 stride-parity planes.

    Planes stay bf16 in HBM/VMEM (half the DMA bytes); the +1-shifted window slices
    are done on in-kernel f32 values (the cast rides on VALU slack of this
    memory-bound op) instead of packed bf16 refs.
    """
    ho, wo = o_ref.shape[1], o_ref.shape[2]
    p00 = p00_ref[0].astype(jnp.float32)
    p01 = p01_ref[0].astype(jnp.float32)
    p10 = p10_ref[0].astype(jnp.float32)
    p11 = p11_ref[0].astype(jnp.float32)
    m = p00[:ho, :wo, :]
    m = jnp.maximum(m, p00[:ho, 1:wo + 1, :])
    m = jnp.maximum(m, p00[1:ho + 1, :wo, :])
    m = jnp.maximum(m, p00[1:ho + 1, 1:wo + 1, :])
    m = jnp.maximum(m, p01[:ho, :wo, :])
    m = jnp.maximum(m, p01[1:ho + 1, :wo, :])
    m = jnp.maximum(m, p10[:ho, :wo, :])
    m = jnp.maximum(m, p10[:ho, 1:wo + 1, :])
    m = jnp.maximum(m, p11[:ho, :wo, :])
    o_ref[0] = m.astype(o_ref.dtype)


# ----------------------------------------------------------------------------
# Pallas wrappers
# ----------------------------------------------------------------------------
def matmul_bias_act(x, w, b, residual=None, relu=True):
    """x:(M,K) bf16, w:(K,Cout) bf16 (BN scale folded in), b:(1,Cout) f32 -> (M,Cout) bf16."""
    M, K = x.shape
    assert K == w.shape[0]
    cout = w.shape[1]

    tm = _rup(M, SUB) if M <= 512 else 512
    Mp = _rup(M, tm)
    if Mp != M:
        x = jnp.pad(x, ((0, Mp - M), (0, 0)))
        if residual is not None:
            residual = jnp.pad(residual, ((0, Mp - M), (0, 0)))

    tn = _pick_tn(cout)
    has_res = residual is not None

    # grid = (cout tiles, M tiles); M innermost so the (K, tn) weight block index is
    # unchanged across consecutive steps -> Pallas keeps it resident (no re-DMA).
    in_specs = [
        pl.BlockSpec((tm, K), lambda j, i: (i, 0)),
        pl.BlockSpec((K, tn), lambda j, i: (0, j)),
        pl.BlockSpec((1, tn), lambda j, i: (0, j)),
    ]
    args = [x, w, b]
    if has_res:
        in_specs.append(pl.BlockSpec((tm, tn), lambda j, i: (i, j)))
        args.append(residual)

    out = pl.pallas_call(
        functools.partial(_mm_kernel, relu=relu, has_res=has_res),
        out_shape=jax.ShapeDtypeStruct((Mp, cout), jnp.bfloat16),
        grid_spec=pltpu.PrefetchScalarGridSpec(
            num_scalar_prefetch=0,
            grid=(cout // tn, Mp // tm),
            in_specs=in_specs,
            out_specs=pl.BlockSpec((tm, tn), lambda j, i: (i, j)),
        ),
        compiler_params=_cparams(2),
    )(*args)
    return out[:M]


def conv1x1_bn(x, cp, relu=True, residual=None):
    """1x1 conv (+folded BN) [+residual] [+ReLU].  Stride handled by XLA slicing."""
    s = cp["s"]
    if s > 1:
        x = x[:, ::s, ::s, :]
    N, Ho, Wo, C = x.shape
    cin_p = cp["cin_p"]
    if C != cin_p:
        # upstream layers already emit lane-dense (128-padded) channels, so this is
        # normally a no-op; kept for generality.
        x = jnp.pad(x, ((0, 0), (0, 0), (0, 0), (0, cin_p - C)))
    cout = cp["w"].shape[1]
    xm = x.reshape(N * Ho * Wo, cin_p)
    rm = None if residual is None else residual.reshape(N * Ho * Wo, cout)
    y = matmul_bias_act(xm, cp["w"], cp["b"], residual=rm, relu=relu)
    return y.reshape(N, Ho, Wo, cout)


def conv_stem(x, cp, relu=True):
    """conv1 7x7/s2/p3 (cin=3) via XLA im2col (K = 7*7*3 = 147 padded to 256) + the fused
    Pallas matmul.  Avoids the ~42x waste of padding cin 3 -> 128 in a direct conv and is
    fully M-tiled (no huge VMEM-resident planes on v7x)."""
    k, s, p = cp["k"], cp["s"], cp["p"]
    N, H, W, C = x.shape
    Ho = (H + 2 * p - k) // s + 1
    Wo = (W + 2 * p - k) // s + 1
    xpad = jnp.pad(x, ((0, 0), (p, p), (p, p), (0, 0)))
    cols = []
    for i in range(k):
        for j in range(k):
            cols.append(xpad[:, i:i + (Ho - 1) * s + 1:s, j:j + (Wo - 1) * s + 1:s, :])
    patches = jnp.concatenate(cols, axis=-1)          # (N, Ho, Wo, k*k*C)
    K = k * k * C
    Kp = cp["w"].shape[0]
    xm = patches.reshape(N * Ho * Wo, K)
    if Kp != K:
        xm = jnp.pad(xm, ((0, 0), (0, Kp - K)))
    cout = cp["w"].shape[1]
    y = matmul_bias_act(xm, cp["w"], cp["b"], relu=relu)
    return y.reshape(N, Ho, Wo, cout)


def convk_bn(x, cp, relu=True):
    """kxk conv (k>1, the 3x3s) + folded BN + ReLU, computed directly from bf16 NHWC.

    No im2col: the kernel accumulates the k*k taps over flattened stride-parity planes.
    Planes stay bf16 (HBM traffic ~1x the activation volume); the row stride V is padded
    to a multiple of 16 so all tap row offsets are bf16-sublane-aligned.  The kernel
    writes the full (Ho*V) slab so the downstream reshape is free and only the cheap
    [:, :, :Wo, :] slice (fused into the consumer) remains.
    """
    k, s, d, p = cp["k"], cp["s"], cp["d"], cp["p"]
    cin_p = cp["cin_p"]
    N, H, W, C = x.shape
    cout = cp["w"].shape[1]
    Ho = (H + 2 * p - d * (k - 1) - 1) // s + 1
    Wo = (W + 2 * p - d * (k - 1) - 1) // s + 1

    U0 = -(-(H + 2 * p) // s)
    V0 = -(-(W + 2 * p) // s)
    V = _rup(V0, SUB)   # sublane-aligned row stride for packed bf16

    def tap_loc(i, j):
        ii, jj = i * d, j * d
        return (ii % s) * s + (jj % s), (ii // s) * V, jj // s

    mo = Ho * V                         # full flat output rows (junk cols sliced later)
    rmax = max(tap_loc(i, j)[1] for i in range(k) for j in range(k))
    cmax = max(tap_loc(i, j)[2] for i in range(k) for j in range(k))
    ld = mo + cmax                      # per-tap input window length
    U = max(U0, -(-(rmax + ld) // V))   # plane rows (adds ~1 halo row of zero padding)

    xpad = jnp.pad(x, ((0, 0), (p, U * s - H - p), (p, V * s - W - p),
                       (0, cin_p - C)))
    r = xpad.reshape(N, U, s, V, s, cin_p)
    planes = [r[:, :, a, :, b, :].reshape(N, U * V, cin_p)
              for a in range(s) for b in range(s)]
    Lp = U * V

    taps = [tap_loc(i, j) + ((i * k + j) * cin_p,)
            for i in range(k) for j in range(k)]

    tn = _pick_tn(cout)
    n_planes = len(planes)
    # grid = (cout tiles, batch); batch innermost -> the big (k*k*cin_p, tn) weight block
    # index is unchanged across consecutive steps (no redundant weight re-DMA).
    # NOTE: with the conv1 stem handled by im2col+matmul, the remaining 3x3 planes are
    # sub-MiB per (batch, parity) block even at 224-class resolutions, so full-plane
    # residency double-buffers comfortably inside v7x's 64 MiB VMEM.
    # TODO(synk): add halo-tiled Mo windows for very large spatial inputs (>512px).
    in_specs = [pl.BlockSpec((1, Lp, cin_p), lambda j, n: (n, 0, 0))
                for _ in range(n_planes)]
    in_specs += [
        pl.BlockSpec((cp["w"].shape[0], tn), lambda j, n: (0, j)),
        pl.BlockSpec((1, tn), lambda j, n: (0, j)),
    ]

    out = pl.pallas_call(
        functools.partial(_conv_tap_kernel, n_planes=n_planes, taps=taps,
                          cin=cin_p, ld=ld, mo=mo, relu=relu),
        out_shape=jax.ShapeDtypeStruct((N, mo, cout), jnp.bfloat16),
        grid_spec=pltpu.PrefetchScalarGridSpec(
            num_scalar_prefetch=0,
            grid=(cout // tn, N),
            in_specs=in_specs,
            out_specs=pl.BlockSpec((1, mo, tn), lambda j, n: (n, 0, j)),
        ),
        compiler_params=_cparams(2),
    )(*(planes + [cp["w"], cp["b"]]))

    # mo == Ho*V -> this reshape is free (no pad pass); the :Wo slice fuses downstream.
    return out.reshape(N, Ho, V, cout)[:, :, :Wo, :]


def maxpool_3x3_s2_p1(x):
    """MaxPool2d(kernel_size=3, stride=2, padding=1) on bf16 NHWC via stride-parity planes."""
    N, H, W, C = x.shape
    Ho = (H + 2 - 3) // 2 + 1
    Wo = (W + 2 - 3) // 2 + 1
    ph = 2 * (Ho + 1) - 1 - H
    pw = 2 * (Wo + 1) - 1 - W
    xpad = jnp.pad(x, ((0, 0), (1, ph), (1, pw), (0, 0)), constant_values=-jnp.inf)
    r = xpad.reshape(N, Ho + 1, 2, Wo + 1, 2, C)
    planes = [r[:, :, a, :, b, :] for a in (0, 1) for b in (0, 1)]

    out = pl.pallas_call(
        _maxpool_kernel,
        out_shape=jax.ShapeDtypeStruct((N, Ho, Wo, C), jnp.bfloat16),
        grid=(N,),
        in_specs=[pl.BlockSpec((1, Ho + 1, Wo + 1, C), lambda n: (n, 0, 0, 0))
                  for _ in range(4)],
        out_specs=pl.BlockSpec((1, Ho, Wo, C), lambda n: (n, 0, 0, 0)),
        compiler_params=_cparams(1),
    )(*planes)
    return out


# ----------------------------------------------------------------------------
# Parameter construction (deterministic, mirrors _init_weight; BN folded at init)
# ----------------------------------------------------------------------------
class _ParamGen:
    def __init__(self, key):
        self.key = key

    def conv_bn(self, k, cin, cout, stride=1, dilation=1, padding=0, stem=False):
        self.key, sub = jax.random.split(self.key)
        std = math.sqrt(2.0 / (k * k * cout))
        w = jax.random.normal(sub, (k, k, cin, cout), jnp.float32) * std
        # Fresh inference-mode BN (gamma=1, beta=0, mean=0, var=1) folded into the conv.
        gamma = jnp.ones((cout,), jnp.float32)
        beta = jnp.zeros((cout,), jnp.float32)
        mean = jnp.zeros((cout,), jnp.float32)
        var = jnp.ones((cout,), jnp.float32)
        scale = gamma / jnp.sqrt(var + BN_EPS)
        bias = beta - mean * scale
        w = w * scale

        # Lane-dense outputs: zero-pad cout to a multiple of 128 (zero filters / zero
        # bias).  The junk channels stay exactly zero through ReLU and are consumed by
        # the next conv's zero-padded cin rows, so the math is unchanged but every store
        # is a full 128-lane vst.
        cout_p = _rup(cout, LANE)
        w = jnp.pad(w, ((0, 0), (0, 0), (0, 0), (0, cout_p - cout)))
        bias = jnp.pad(bias, (0, cout_p - cout))
        cp = {"k": k, "s": stride, "d": dilation, "p": padding,
              "b": bias.reshape(1, cout_p)}

        if stem:
            # conv1 (cin=3): im2col layout, K = k*k*cin padded to a 128 multiple.
            K = k * k * cin
            Kp = _rup(K, LANE)
            wm = jnp.pad(w.reshape(K, cout_p), ((0, Kp - K), (0, 0)))
            cp["w"] = wm.astype(jnp.bfloat16)
            cp["cin_p"] = cin
            return cp

        cin_p = _rup(cin, LANE)
        w = jnp.pad(w, ((0, 0), (0, 0), (0, cin_p - cin), (0, 0)))
        if k == 1:
            cp["w"] = w.reshape(cin_p, cout_p).astype(jnp.bfloat16)
        else:
            cp["w"] = w.reshape(k * k * cin_p, cout_p).astype(jnp.bfloat16)
        cp["cin_p"] = cin_p
        return cp


def init_resnet_params(key, layers=(1, 1, 1), output_stride=16):
    if output_stride == 16:
        strides = [1, 2, 2, 1]
        dilations = [1, 1, 1, 2]
    elif output_stride == 8:
        strides = [1, 2, 1, 1]
        dilations = [1, 1, 2, 4]
    else:
        raise NotImplementedError
    mg_blocks = [1, 2, 4]

    pg = _ParamGen(key)
    params = {"conv1": pg.conv_bn(7, 3, 64, stride=2, dilation=1, padding=3, stem=True)}
    inplanes = 64

    def make_blocks(planes, strides_list, dilations_list):
        nonlocal inplanes
        layer = []
        for s, d in zip(strides_list, dilations_list):
            blk = {
                "c1": pg.conv_bn(1, inplanes, planes),
                "c2": pg.conv_bn(3, planes, planes, stride=s, dilation=d, padding=d),
                "c3": pg.conv_bn(1, planes, planes * EXPANSION),
            }
            if s != 1 or inplanes != planes * EXPANSION:
                blk["cd"] = pg.conv_bn(1, inplanes, planes * EXPANSION, stride=s)
            layer.append(blk)
            inplanes = planes * EXPANSION
        return layer

    params["layer1"] = make_blocks(64, [strides[0]] + [1] * (layers[0] - 1),
                                   [dilations[0]] * layers[0])
    params["layer2"] = make_blocks(128, [strides[1]] + [1] * (layers[1] - 1),
                                   [dilations[1]] * layers[1])
    params["layer3"] = make_blocks(256, [strides[2]] + [1] * (layers[2] - 1),
                                   [dilations[2]] * layers[2])
    # layer4: multi-grid unit, dilations = blocks[i] * dilation, stride only on first.
    params["layer4"] = make_blocks(
        512, [strides[3]] + [1] * (len(mg_blocks) - 1),
        [b * dilations[3] for b in mg_blocks])
    return params


# ----------------------------------------------------------------------------
# Forward pass
# ----------------------------------------------------------------------------
def bottleneck_forward(blk, x):
    out = conv1x1_bn(x, blk["c1"], relu=True)
    out = convk_bn(out, blk["c2"], relu=True)
    if "cd" in blk:
        identity = conv1x1_bn(x, blk["cd"], relu=False)
    else:
        identity = x
    # conv3 + bn3 + residual add + final ReLU fused in the matmul epilogue.
    out = conv1x1_bn(out, blk["c3"], relu=True, residual=identity)
    return out


def resnet_forward(params, x_nchw):
    x = jnp.transpose(x_nchw, (0, 2, 3, 1)).astype(jnp.bfloat16)  # NCHW -> NHWC
    x = conv_stem(x, params["conv1"], relu=True)
    x = maxpool_3x3_s2_p1(x)
    for blk in params["layer1"]:
        x = bottleneck_forward(blk, x)
    low_level_feat = x
    for name in ("layer2", "layer3", "layer4"):
        for blk in params[name]:
            x = bottleneck_forward(blk, x)
    # back to PyTorch NCHW convention (and f32) for outputs
    x = jnp.transpose(x, (0, 3, 1, 2)).astype(jnp.float32)
    low_level_feat = jnp.transpose(low_level_feat, (0, 3, 1, 2)).astype(jnp.float32)
    return x, low_level_feat


# ----------------------------------------------------------------------------
# Main
# ----------------------------------------------------------------------------
if __name__ == "__main__":
    # small shapes: batch=2, 3-channel 32x32 input (conv1 requires 3 input channels),
    # layers=[1,1,1] bottleneck blocks for layer1..3, layer4 is the fixed 3-block MG unit.
    key_in = jax.random.PRNGKey(0)
    x = jax.random.normal(key_in, (2, 3, 32, 32), jnp.float32)

    params = init_resnet_params(jax.random.PRNGKey(1), layers=(1, 1, 1),
                                output_stride=16)

    out, low = resnet_forward(params, x)
    out = jax.block_until_ready(out)
    low = jax.block_until_ready(low)

    assert out.shape == (2, 2048, 2, 2), out.shape
    assert low.shape == (2, 256, 8, 8), low.shape
    assert jnp.isfinite(out).all() and jnp.isfinite(low).all()
    print("KERNEL_OK")
</pallas_src>

<mosaic_0001>
module attributes {stable_mosaic.version = 11 : i64} {
  func.func @_mm_kernel(%arg0: i32, %arg1: i32, %arg2: memref<512x256xbf16, #tpu.memory_space<vmem>>, %arg3: memref<256x128xbf16, #tpu.memory_space<vmem>>, %arg4: memref<1x128xf32, #tpu.memory_space<vmem>>, %arg5: memref<512x128xbf16, #tpu.memory_space<vmem>>) attributes {dimension_semantics = [#tpu.dimension_semantics<parallel>, #tpu.dimension_semantics<parallel>], iteration_bounds = array<i64: 1, 1>, scalar_prefetch = 0 : i64, scratch_operands = 0 : i64, tpu.core_type = #tpu.core_type<tc>, window_params = [{transform_indices = @transform_0, window_bounds = array<i64: 512, 256>}, {transform_indices = @transform_1, window_bounds = array<i64: 256, 128>}, {transform_indices = @transform_2, window_bounds = array<i64: 1, 128>}, {transform_indices = @transform_3, window_bounds = array<i64: 512, 128>}]} {
    %c0 = arith.constant 0 : index
    %c0_0 = arith.constant 0 : index
    %0 = vector.load %arg2[%c0, %c0_0] : memref<512x256xbf16, #tpu.memory_space<vmem>>, vector<512x256xbf16>
    %c0_1 = arith.constant 0 : index
    %c0_2 = arith.constant 0 : index
    %1 = vector.load %arg3[%c0_1, %c0_2] : memref<256x128xbf16, #tpu.memory_space<vmem>>, vector<256x128xbf16>
    %cst = arith.constant dense<0.000000e+00> : vector<512x128xf32>
    %2 = tpu.matmul %0, %1, %cst {dimension_numbers = #tpu.dot_dimension_numbers<[1], [0], [0], [1], [0, 0, 1, 1], [], []>} : vector<512x256xbf16>, vector<256x128xbf16>, vector<512x128xf32> -> vector<512x128xf32>
    %c0_3 = arith.constant 0 : index
    %c0_4 = arith.constant 0 : index
    %3 = vector.load %arg4[%c0_3, %c0_4] : memref<1x128xf32, #tpu.memory_space<vmem>>, vector<1x128xf32>
    %4 = vector.broadcast %3 : vector<1x128xf32> to vector<512x128xf32>
    %5 = arith.addf %2, %4 : vector<512x128xf32>
    %cst_5 = arith.constant 0.000000e+00 : f32
    %6 = vector.broadcast %cst_5 : f32 to vector<512x128xf32>
    %7 = arith.maximumf %5, %6 : vector<512x128xf32>
    %8 = arith.truncf %7 : vector<512x128xf32> to vector<512x128xbf16>
    %c0_6 = arith.constant 0 : index
    %c0_7 = arith.constant 0 : index
    %9 = vector.load %arg5[%c0_6, %c0_7] : memref<512x128xbf16, #tpu.memory_space<vmem>>, vector<512x128xbf16>
    tpu.vector_store %arg5[%c0_6, %c0_7], %8 {strides = array<i32>} : memref<512x128xbf16, #tpu.memory_space<vmem>>, vector<512x128xbf16>,
    return
  }
  func.func @transform_0(%arg0: i32, %arg1: i32) -> (i32, i32) {
    %c0_i32 = arith.constant 0 : i32
    %c0_i32_0 = arith.constant 0 : i32
    return %arg1, %c0_i32 : i32, i32
  }
  func.func @transform_1(%arg0: i32, %arg1: i32) -> (i32, i32) {
    %c0_i32 = arith.constant 0 : i32
    %c0_i32_0 = arith.constant 0 : i32
    return %c0_i32, %arg0 : i32, i32
  }
  func.func @transform_2(%arg0: i32, %arg1: i32) -> (i32, i32) {
    %c0_i32 = arith.constant 0 : i32
    %c0_i32_0 = arith.constant 0 : i32
    return %c0_i32, %arg0 : i32, i32
  }
  func.func @transform_3(%arg0: i32, %arg1: i32) -> (i32, i32) {
    %c0_i32 = arith.constant 0 : i32
    return %arg1, %arg0 : i32, i32
  }
}

</mosaic_0001>

<llo_original>
// kernel: tpu_custom_call.1
$region0: #{tpu_custom_call.1}
  #allocation0 [shape = 'u32[]', space=smem, size = 0x4, offset = 0x4, fixed_abs, tag = 'smem constant byte address 0x4 - core index']
  #allocation1 [shape = 'u32[144,128]{1,0:T(1,128)}', space=vmem, size = 0x12000, scoped, tag = 'internal scratch']
  %s0 = inlined_call_operand.hbm [shape: bf16[512,256], index: 0, kind: input, shape index: {}]
  %s1 = inlined_call_operand.hbm [shape: bf16[256,128], index: 1, kind: input, shape index: {}]
  %s2 = inlined_call_operand.vmem [shape: f32[1,128], index: 2, kind: input, shape index: {}]
  %s3 = inlined_call_operand.hbm [shape: bf16[512,128], index: 3, kind: output, shape index: {}]
  %s4 = sld [smem:[#allocation0]]
  $region30: #{tpu_custom_call.1} parent=0
    _
  %s6 = ssub.s32 1, %s4
  %s7 = scalar_select 0, %s6, %s4
  $region1: #{tpu_custom_call.1} parent=0
    #allocation2 [shape = 'u8[262144]{0}', space=vmem, size = 0x40000, scoped, tag = 'input window, operand 0, single buffered']
    #allocation3 [shape = 's32[1]{0}', space=sflag, size = 0x4, scoped, tag = 'scoped memory for tpu_custom_call.1']
    #allocation4 [shape = 's32[1]{0}', space=sflag, size = 0x4, scoped, tag = 'scoped memory for tpu_custom_call.1']
    #allocation5 [shape = 'u8[65536]{0}', space=vmem, size = 0x10000, scoped, tag = 'input window, operand 1, single buffered']
    #allocation6 [shape = 's32[1]{0}', space=sflag, size = 0x4, scoped, tag = 'scoped memory for tpu_custom_call.1']
    #allocation7 [shape = 'u8[131072]{0}', space=vmem, size = 0x20000, scoped, tag = 'output window, operand 0, single buffered']
    %8 = vsyncpa [#allocation3], 0
    %9 = vsyncpa [#allocation6], 0
    %10 = vsyncpa [#allocation4], 0
    // Predicated region
    $region2: #{tpu_custom_call.1} parent=1 // pred_check
      _
    $region3: #{tpu_custom_call.1} parent=1 // pred_check_branch
      %12 = sbr.rel (0) target = $region5
    $region4: #{tpu_custom_call.1} parent=1 // pred_region
      %s14 = ssub.s32 8192, 8192
      %15 = vsyncadd [#allocation3], %s14
      %s16 = sshll.u32 [#allocation2], 4
      %s17 = int_to_ptr.vmem [resolvable:$true] %s16
      %22 = dma.hbm_to_vmem [thread:$0]  %s0, 8192, %s17, [#allocation3], 128, 128, 8
    $region5: #{tpu_custom_call.1} parent=1 // pred_fallthru
      _
    // Predicated region
    $region6: #{tpu_custom_call.1} parent=1 // pred_check
      _
    $region7: #{tpu_custom_call.1} parent=1 // pred_check_branch
      %24 = sbr.rel (0) target = $region9
    $region8: #{tpu_custom_call.1} parent=1 // pred_region
      %s26 = ssub.s32 2048, 2048
      %27 = vsyncadd [#allocation6], %s26
      %s28 = sshll.u32 [#allocation5], 4
      %s29 = int_to_ptr.vmem [resolvable:$true] %s28
      %34 = dma.hbm_to_vmem [thread:$0]  %s1, 2048, %s29, [#allocation6], 64, 64, 4
    $region9: #{tpu_custom_call.1} parent=1 // pred_fallthru
      _
    // Predicated region
    $region10: #{tpu_custom_call.1} parent=1 // pred_check
      _
    $region11: #{tpu_custom_call.1} parent=1 // pred_check_branch
      %36 = sbr.rel (0) target = $region13
    $region12: #{tpu_custom_call.1} parent=1 // pred_region
      _
    $region13: #{tpu_custom_call.1} parent=1 // pred_fallthru
      _
    // Predicated region
    $region14: #{tpu_custom_call.1} parent=1 // pred_check
      _
    $region15: #{tpu_custom_call.1} parent=1 // pred_check_branch
      %38 = sbr.rel (0) target = $region17
    $region16: #{tpu_custom_call.1} parent=1 // pred_region
      %39 = dma.done [#allocation3], 8192
    $region17: #{tpu_custom_call.1} parent=1 // pred_fallthru
      _
    // Predicated region
    $region18: #{tpu_custom_call.1} parent=1 // pred_check
      _
    $region19: #{tpu_custom_call.1} parent=1 // pred_check_branch
      %41 = sbr.rel (0) target = $region21
    $region20: #{tpu_custom_call.1} parent=1 // pred_region
      %42 = dma.done [#allocation6], 2048
    $region21: #{tpu_custom_call.1} parent=1 // pred_fallthru
      _
    %v44 = vld [vmem:[#allocation2] sm:$0xff]
    %v45 = vld [vmem:[#allocation2 + $0x8] sm:$0xff]
    %v46 = vld [vmem:[#allocation2 + $0x10] sm:$0xff]
    %v47 = vld [vmem:[#allocation2 + $0x18] sm:$0xff]
    %v48 = vld [vmem:[#allocation2 + $0x20] sm:$0xff]
    %v49 = vld [vmem:[#allocation2 + $0x28] sm:$0xff]
    %v50 = vld [vmem:[#allocation2 + $0x30] sm:$0xff]
    %v51 = vld [vmem:[#allocation2 + $0x38] sm:$0xff]
    %v52 = vld [vmem:[#allocation2 + $0x40] sm:$0xff]
    %v53 = vld [vmem:[#allocation2 + $0x48] sm:$0xff]
    %v54 = vld [vmem:[#allocation2 + $0x50] sm:$0xff]
    %v55 = vld [vmem:[#allocation2 + $0x58] sm:$0xff]
    %v56 = vld [vmem:[#allocation2 + $0x60] sm:$0xff]
    %v57 = vld [vmem:[#allocation2 + $0x68] sm:$0xff]
    %v58 = vld [vmem:[#allocation2 + $0x70] sm:$0xff]
    %v59 = vld [vmem:[#allocation2 + $0x78] sm:$0xff]
    %v60 = vld [vmem:[#allocation2 + $0x80] sm:$0xff]
    %v61 = vld [vmem:[#allocation2 + $0x88] sm:$0xff]
    %v62 = vld [vmem:[#allocation2 + $0x90] sm:$0xff]
    %v63 = vld [vmem:[#allocation2 + $0x98] sm:$0xff]
    %v64 = vld [vmem:[#allocation2 + $0xa0] sm:$0xff]
    %v65 = vld [vmem:[#allocation2 + $0xa8] sm:$0xff]
    %v66 = vld [vmem:[#allocation2 + $0xb0] sm:$0xff]
    %v67 = vld [vmem:[#allocation2 + $0xb8] sm:$0xff]
    %v68 = vld [vmem:[#allocation2 + $0xc0] sm:$0xff]
    %v69 = vld [vmem:[#allocation2 + $0xc8] sm:$0xff]
    %v70 = vld [vmem:[#allocation2 + $0xd0] sm:$0xff]
    %v71 = vld [vmem:[#allocation2 + $0xd8] sm:$0xff]
    %v72 = vld [vmem:[#allocation2 + $0xe0] sm:$0xff]
    %v73 = vld [vmem:[#allocation2 + $0xe8] sm:$0xff]
    %v74 = vld [vmem:[#allocation2 + $0xf0] sm:$0xff]
    %v75 = vld [vmem:[#allocation2 + $0xf8] sm:$0xff]
    %v76 = vld [vmem:[#allocation2 + $0x100] sm:$0xff]
    %v77 = vld [vmem:[#allocation2 + $0x108] sm:$0xff]
    %v78 = vld [vmem:[#allocation2 + $0x110] sm:$0xff]
    %v79 = vld [vmem:[#allocation2 + $0x118] sm:$0xff]
    %v80 = vld [vmem:[#allocation2 + $0x120] sm:$0xff]
    %v81 = vld [vmem:[#allocation2 + $0x128] sm:$0xff]
    %v82 = vld [vmem:[#allocation2 + $0x130] sm:$0xff]
    %v83 = vld [vmem:[#allocation2 + $0x138] sm:$0xff]
    %v84 = vld [vmem:[#allocation2 + $0x140] sm:$0xff]
    %v85 = vld [vmem:[#allocation2 + $0x148] sm:$0xff]
    %v86 = vld [vmem:[#allocation2 + $0x150] sm:$0xff]
    %v87 = vld [vmem:[#allocation2 + $0x158] sm:$0xff]
    %v88 = vld [vmem:[#allocation2 + $0x160] sm:$0xff]
    %v89 = vld [vmem:[#allocation2 + $0x168] sm:$0xff]
    %v90 = vld [vmem:[#allocation2 + $0x170] sm:$0xff]
    %v91 = vld [vmem:[#allocation2 + $0x178] sm:$0xff]
    %v92 = vld [vmem:[#allocation2 + $0x180] sm:$0xff]
    %v93 = vld [vmem:[#allocation2 + $0x188] sm:$0xff]
    %v94 = vld [vmem:[#allocation2 + $0x190] sm:$0xff]
    %v95 = vld [vmem:[#allocation2 + $0x198] sm:$0xff]
    %v96 = vld [vmem:[#allocation2 + $0x1a0] sm:$0xff]
    %v97 = vld [vmem:[#allocation2 + $0x1a8] sm:$0xff]
    %v98 = vld [vmem:[#allocation2 + $0x1b0] sm:$0xff]
    %v99 = vld [vmem:[#allocation2 + $0x1b8] sm:$0xff]
    %v100 = vld [vmem:[#allocation2 + $0x1c0] sm:$0xff]
    %v101 = vld [vmem:[#allocation2 + $0x1c8] sm:$0xff]
    %v102 = vld [vmem:[#allocation2 + $0x1d0] sm:$0xff]
    %v103 = vld [vmem:[#allocation2 + $0x1d8] sm:$0xff]
    %v104 = vld [vmem:[#allocation2 + $0x1e0] sm:$0xff]
    %v105 = vld [vmem:[#allocation2 + $0x1e8] sm:$0xff]
    %v106 = vld [vmem:[#allocation2 + $0x1f0] sm:$0xff]
    %v107 = vld [vmem:[#allocation2 + $0x1f8] sm:$0xff]
    %v108 = vld [vmem:[#allocation5] sm:$0xf]
    %v109 = vld [vmem:[#allocation5 + $0x4] sm:$0xf]
    %v110 = vld [vmem:[#allocation5 + $0x8] sm:$0xf]
    %v111 = vld [vmem:[#allocation5 + $0xc] sm:$0xf]
    %v112 = vld [vmem:[#allocation5 + $0x10] sm:$0xf]
    %v113 = vld [vmem:[#allocation5 + $0x14] sm:$0xf]
    %v114 = vld [vmem:[#allocation5 + $0x18] sm:$0xf]
    %v115 = vld [vmem:[#allocation5 + $0x1c] sm:$0xf]
    %v116 = vld [vmem:[#allocation5 + $0x20] sm:$0xf]
    %v117 = vld [vmem:[#allocation5 + $0x24] sm:$0xf]
    %v118 = vld [vmem:[#allocation5 + $0x28] sm:$0xf]
    %v119 = vld [vmem:[#allocation5 + $0x2c] sm:$0xf]
    %v120 = vld [vmem:[#allocation5 + $0x30] sm:$0xf]
    %v121 = vld [vmem:[#allocation5 + $0x34] sm:$0xf]
    %v122 = vld [vmem:[#allocation5 + $0x38] sm:$0xf]
    %v123 = vld [vmem:[#allocation5 + $0x3c] sm:$0xf]
    %v124 = vld [vmem:[#allocation5 + $0x40] sm:$0xf]
    %v125 = vld [vmem:[#allocation5 + $0x44] sm:$0xf]
    %v126 = vld [vmem:[#allocation5 + $0x48] sm:$0xf]
    %v127 = vld [vmem:[#allocation5 + $0x4c] sm:$0xf]
    %v128 = vld [vmem:[#allocation5 + $0x50] sm:$0xf]
    %v129 = vld [vmem:[#allocation5 + $0x54] sm:$0xf]
    %v130 = vld [vmem:[#allocation5 + $0x58] sm:$0xf]
    %v131 = vld [vmem:[#allocation5 + $0x5c] sm:$0xf]
    %v132 = vld [vmem:[#allocation5 + $0x60] sm:$0xf]
    %v133 = vld [vmem:[#allocation5 + $0x64] sm:$0xf]
    %v134 = vld [vmem:[#allocation5 + $0x68] sm:$0xf]
    %v135 = vld [vmem:[#allocation5 + $0x6c] sm:$0xf]
    %v136 = vld [vmem:[#allocation5 + $0x70] sm:$0xf]
    %v137 = vld [vmem:[#allocation5 + $0x74] sm:$0xf]
    %v138 = vld [vmem:[#allocation5 + $0x78] sm:$0xf]
    %v139 = vld [vmem:[#allocation5 + $0x7c] sm:$0xf]
    %v140 = vld [vmem:[%s2] sm:$0x1]
    %v142 = vlaneseq
    %v143 = vshrl.u32 %v142, 7
    %v144 = vsub.s32 0, %v143
    %v145 = vrot.slane %v140, %v144
    %v211 = vunpack.c.l.b16 %v44
    %v212 = vunpack.c.h.b16 %v44
    %v213 = vunpack.c.l.b16 %v45
    %v214 = vunpack.c.h.b16 %v45
    %v215 = vunpack.c.l.b16 %v46
    %v216 = vunpack.c.h.b16 %v46
    %v217 = vunpack.c.l.b16 %v47
    %v218 = vunpack.c.h.b16 %v47
    %v219 = vunpack.c.l.b16 %v48
    %v220 = vunpack.c.h.b16 %v48
    %v221 = vunpack.c.l.b16 %v49
    %v222 = vunpack.c.h.b16 %v49
    %v223 = vunpack.c.l.b16 %v50
    %v224 = vunpack.c.h.b16 %v50
    %v225 = vunpack.c.l.b16 %v51
    %v226 = vunpack.c.h.b16 %v51
    %v227 = vunpack.c.l.b16 %v52
    %v228 = vunpack.c.h.b16 %v52
    %v229 = vunpack.c.l.b16 %v53
    %v230 = vunpack.c.h.b16 %v53
    %v231 = vunpack.c.l.b16 %v54
    %v232 = vunpack.c.h.b16 %v54
    %v233 = vunpack.c.l.b16 %v55
    %v234 = vunpack.c.h.b16 %v55
    %v235 = vunpack.c.l.b16 %v56
    %v236 = vunpack.c.h.b16 %v56
    %v237 = vunpack.c.l.b16 %v57
    %v238 = vunpack.c.h.b16 %v57
    %v239 = vunpack.c.l.b16 %v58
    %v240 = vunpack.c.h.b16 %v58
    %v241 = vunpack.c.l.b16 %v59
    %v242 = vunpack.c.h.b16 %v59
    %v243 = vunpack.c.l.b16 %v60
    %v244 = vunpack.c.h.b16 %v60
    %v245 = vunpack.c.l.b16 %v61
    %v246 = vunpack.c.h.b16 %v61
    %v247 = vunpack.c.l.b16 %v62
    %v248 = vunpack.c.h.b16 %v62
    %v249 = vunpack.c.l.b16 %v63
    %v250 = vunpack.c.h.b16 %v63
    %v251 = vunpack.c.l.b16 %v64
    %v252 = vunpack.c.h.b16 %v64
    %v253 = vunpack.c.l.b16 %v65
    %v254 = vunpack.c.h.b16 %v65
    %v255 = vunpack.c.l.b16 %v66
    %v256 = vunpack.c.h.b16 %v66
    %v257 = vunpack.c.l.b16 %v67
    %v258 = vunpack.c.h.b16 %v67
    %v259 = vunpack.c.l.b16 %v68
    %v260 = vunpack.c.h.b16 %v68
    %v261 = vunpack.c.l.b16 %v69
    %v262 = vunpack.c.h.b16 %v69
    %v263 = vunpack.c.l.b16 %v70
    %v264 = vunpack.c.h.b16 %v70
    %v265 = vunpack.c.l.b16 %v71
    %v266 = vunpack.c.h.b16 %v71
    %v267 = vunpack.c.l.b16 %v72
    %v268 = vunpack.c.h.b16 %v72
    %v269 = vunpack.c.l.b16 %v73
    %v270 = vunpack.c.h.b16 %v73
    %v271 = vunpack.c.l.b16 %v74
    %v272 = vunpack.c.h.b16 %v74
    %v273 = vunpack.c.l.b16 %v75
    %v274 = vunpack.c.h.b16 %v75
    %v275 = vunpack.c.l.b16 %v76
    %v276 = vunpack.c.h.b16 %v76
    %v277 = vunpack.c.l.b16 %v77
    %v278 = vunpack.c.h.b16 %v77
    %v279 = vunpack.c.l.b16 %v78
    %v280 = vunpack.c.h.b16 %v78
    %v281 = vunpack.c.l.b16 %v79
    %v282 = vunpack.c.h.b16 %v79
    %v283 = vunpack.c.l.b16 %v80
    %v284 = vunpack.c.h.b16 %v80
    %v285 = vunpack.c.l.b16 %v81
    %v286 = vunpack.c.h.b16 %v81
    %v287 = vunpack.c.l.b16 %v82
    %v288 = vunpack.c.h.b16 %v82
    %v289 = vunpack.c.l.b16 %v83
    %v290 = vunpack.c.h.b16 %v83
    %v291 = vunpack.c.l.b16 %v84
    %v292 = vunpack.c.h.b16 %v84
    %v293 = vunpack.c.l.b16 %v85
    %v294 = vunpack.c.h.b16 %v85
    %v295 = vunpack.c.l.b16 %v86
    %v296 = vunpack.c.h.b16 %v86
    %v297 = vunpack.c.l.b16 %v87
    %v298 = vunpack.c.h.b16 %v87
    %v299 = vunpack.c.l.b16 %v88
    %v300 = vunpack.c.h.b16 %v88
    %v301 = vunpack.c.l.b16 %v89
    %v302 = vunpack.c.h.b16 %v89
    %v303 = vunpack.c.l.b16 %v90
    %v304 = vunpack.c.h.b16 %v90
    %v305 = vunpack.c.l.b16 %v91
    %v306 = vunpack.c.h.b16 %v91
    %v307 = vunpack.c.l.b16 %v92
    %v308 = vunpack.c.h.b16 %v92
    %v309 = vunpack.c.l.b16 %v93
    %v310 = vunpack.c.h.b16 %v93
    %v311 = vunpack.c.l.b16 %v94
    %v312 = vunpack.c.h.b16 %v94
    %v313 = vunpack.c.l.b16 %v95
    %v314 = vunpack.c.h.b16 %v95
    %v315 = vunpack.c.l.b16 %v96
    %v316 = vunpack.c.h.b16 %v96
    %v317 = vunpack.c.l.b16 %v97
    %v318 = vunpack.c.h.b16 %v97
    %v319 = vunpack.c.l.b16 %v98
    %v320 = vunpack.c.h.b16 %v98
    %v321 = vunpack.c.l.b16 %v99
    %v322 = vunpack.c.h.b16 %v99
    %v323 = vunpack.c.l.b16 %v100
    %v324 = vunpack.c.h.b16 %v100
    %v325 = vunpack.c.l.b16 %v101
    %v326 = vunpack.c.h.b16 %v101
    %v327 = vunpack.c.l.b16 %v102
    %v328 = vunpack.c.h.b16 %v102
    %v329 = vunpack.c.l.b16 %v103
    %v330 = vunpack.c.h.b16 %v103
    %v331 = vunpack.c.l.b16 %v104
    %v332 = vunpack.c.h.b16 %v104
    %v333 = vunpack.c.l.b16 %v105
    %v334 = vunpack.c.h.b16 %v105
    %v335 = vunpack.c.l.b16 %v106
    %v336 = vunpack.c.h.b16 %v106
    %v337 = vunpack.c.l.b16 %v107
    %v338 = vunpack.c.h.b16 %v107
    %v339 = vpack.c.b16 %v213, %v211
    %v340 = vpack.c.b16 %v214, %v212
    %v341 = vpack.c.b16 %v217, %v215
    %v342 = vpack.c.b16 %v218, %v216
    %v343 = vpack.c.b16 %v221, %v219
    %v344 = vpack.c.b16 %v222, %v220
    %v345 = vpack.c.b16 %v225, %v223
    %v346 = vpack.c.b16 %v226, %v224
    %v347 = vpack.c.b16 %v229, %v227
    %v348 = vpack.c.b16 %v230, %v228
    %v349 = vpack.c.b16 %v233, %v231
    %v350 = vpack.c.b16 %v234, %v232
    %v351 = vpack.c.b16 %v237, %v235
    %v352 = vpack.c.b16 %v238, %v236
    %v353 = vpack.c.b16 %v241, %v239
    %v354 = vpack.c.b16 %v242, %v240
    %v355 = vpack.c.b16 %v245, %v243
    %v356 = vpack.c.b16 %v246, %v244
    %v357 = vpack.c.b16 %v249, %v247
    %v358 = vpack.c.b16 %v250, %v248
    %v359 = vpack.c.b16 %v253, %v251
    %v360 = vpack.c.b16 %v254, %v252
    %v361 = vpack.c.b16 %v257, %v255
    %v362 = vpack.c.b16 %v258, %v256
    %v363 = vpack.c.b16 %v261, %v259
    %v364 = vpack.c.b16 %v262, %v260
    %v365 = vpack.c.b16 %v265, %v263
    %v366 = vpack.c.b16 %v266, %v264
    %v367 = vpack.c.b16 %v269, %v267
    %v368 = vpack.c.b16 %v270, %v268
    %v369 = vpack.c.b16 %v273, %v271
    %v370 = vpack.c.b16 %v274, %v272
    %v371 = vpack.c.b16 %v277, %v275
    %v372 = vpack.c.b16 %v278, %v276
    %v373 = vpack.c.b16 %v281, %v279
    %v374 = vpack.c.b16 %v282, %v280
    %v375 = vpack.c.b16 %v285, %v283
    %v376 = vpack.c.b16 %v286, %v284
    %v377 = vpack.c.b16 %v289, %v287
    %v378 = vpack.c.b16 %v290, %v288
    %v379 = vpack.c.b16 %v293, %v291
    %v380 = vpack.c.b16 %v294, %v292
    %v381 = vpack.c.b16 %v297, %v295
    %v382 = vpack.c.b16 %v298, %v296
    %v383 = vpack.c.b16 %v301, %v299
    %v384 = vpack.c.b16 %v302, %v300
    %v385 = vpack.c.b16 %v305, %v303
    %v386 = vpack.c.b16 %v306, %v304
    %v387 = vpack.c.b16 %v309, %v307
    %v388 = vpack.c.b16 %v310, %v308
    %v389 = vpack.c.b16 %v313, %v311
    %v390 = vpack.c.b16 %v314, %v312
    %v391 = vpack.c.b16 %v317, %v315
    %v392 = vpack.c.b16 %v318, %v316
    %v393 = vpack.c.b16 %v321, %v319
    %v394 = vpack.c.b16 %v322, %v320
    %v395 = vpack.c.b16 %v325, %v323
    %v396 = vpack.c.b16 %v326, %v324
    %v397 = vpack.c.b16 %v329, %v327
    %v398 = vpack.c.b16 %v330, %v328
    %v399 = vpack.c.b16 %v333, %v331
    %v400 = vpack.c.b16 %v334, %v332
    %v401 = vpack.c.b16 %v337, %v335
    %v402 = vpack.c.b16 %v338, %v336
    %v499 = vunpack.c.l.b16 %v108
    %v500 = vunpack.c.l.b16 %v109
    %v501 = vunpack.c.l.b16 %v110
    %v502 = vunpack.c.l.b16 %v111
    %v503 = vunpack.c.l.b16 %v112
    %v504 = vunpack.c.l.b16 %v113
    %v505 = vunpack.c.l.b16 %v114
    %v506 = vunpack.c.l.b16 %v115
    %v507 = vunpack.c.l.b16 %v116
    %v508 = vunpack.c.l.b16 %v117
    %v509 = vunpack.c.l.b16 %v118
    %v510 = vunpack.c.l.b16 %v119
    %v511 = vunpack.c.l.b16 %v120
    %v512 = vunpack.c.l.b16 %v121
    %v513 = vunpack.c.l.b16 %v122
    %v514 = vunpack.c.l.b16 %v123
    %v515 = vunpack.c.l.b16 %v124
    %v516 = vunpack.c.l.b16 %v125
    %v517 = vunpack.c.l.b16 %v126
    %v518 = vunpack.c.l.b16 %v127
    %v519 = vunpack.c.l.b16 %v128
    %v520 = vunpack.c.l.b16 %v129
    %v521 = vunpack.c.l.b16 %v130
    %v522 = vunpack.c.l.b16 %v131
    %v523 = vunpack.c.l.b16 %v132
    %v524 = vunpack.c.l.b16 %v133
    %v525 = vunpack.c.l.b16 %v134
    %v526 = vunpack.c.l.b16 %v135
    %v527 = vunpack.c.l.b16 %v136
    %v528 = vunpack.c.l.b16 %v137
    %v529 = vunpack.c.l.b16 %v138
    %v530 = vunpack.c.l.b16 %v139
    %v531 = vpack.c.b16 %v500, %v499
    %v532 = vpack.c.b16 %v502, %v501
    %v533 = vpack.c.b16 %v504, %v503
    %v534 = vpack.c.b16 %v506, %v505
    %v535 = vpack.c.b16 %v508, %v507
    %v536 = vpack.c.b16 %v510, %v509
    %v537 = vpack.c.b16 %v512, %v511
    %v538 = vpack.c.b16 %v514, %v513
    %v539 = vpack.c.b16 %v516, %v515
    %v540 = vpack.c.b16 %v518, %v517
    %v541 = vpack.c.b16 %v520, %v519
    %v542 = vpack.c.b16 %v522, %v521
    %v543 = vpack.c.b16 %v524, %v523
    %v544 = vpack.c.b16 %v526, %v525
    %v545 = vpack.c.b16 %v528, %v527
    %v546 = vpack.c.b16 %v530, %v529
    %563 = vmatprep.subr.bf16.mxu0 0
    %564 = vmatpush1.bf16.msra.mxu0 %v538
    %565 = vmatprep.subr.bf16.mxu0 0
    %566 = vmatpush1.bf16.msra.mxu0 %v537
    %567 = vmatprep.subr.bf16.mxu0 0
    %568 = vmatpush1.bf16.msra.mxu0 %v536
    %569 = vmatprep.subr.bf16.mxu0 0
    %570 = vmatpush1.bf16.msra.mxu0 %v535
    %571 = vmatprep.subr.bf16.mxu0 0
    %572 = vmatpush1.bf16.msra.mxu0 %v534
    %573 = vmatprep.subr.bf16.mxu0 0
    %574 = vmatpush1.bf16.msra.mxu0 %v533
    %575 = vmatprep.subr.bf16.mxu0 0
    %576 = vmatpush1.bf16.msra.mxu0 %v532
    %577 = vmatprep.subr.bf16.mxu0 0
    %578 = vmatpush1.bf16.msra.mxu0 %v531
    %579 = vmatprep.subr.bf16.mxu0 0
    %580 = vmatpush2.bf16.msra.mxu0 %v546
    %581 = vmatprep.subr.bf16.mxu0 0
    %582 = vmatpush2.bf16.msra.mxu0 %v545
    %583 = vmatprep.subr.bf16.mxu0 0
    %584 = vmatpush2.bf16.msra.mxu0 %v544
    %585 = vmatprep.subr.bf16.mxu0 0
    %586 = vmatpush2.bf16.msra.mxu0 %v543
    %587 = vmatprep.subr.bf16.mxu0 0
    %588 = vmatpush2.bf16.msra.mxu0 %v542
    %589 = vmatprep.subr.bf16.mxu0 0
    %590 = vmatpush2.bf16.msra.mxu0 %v541
    %591 = vmatprep.subr.bf16.mxu0 0
    %592 = vmatpush2.bf16.msra.mxu0 %v540
    %593 = vmatprep.subr.bf16.mxu0 0
    %594 = vmatpush2.bf16.msra.mxu0 %v539
    %595 = vmatprep.mubr.bf16.mxu0 %v340
    %596 = vmatmul.mubr.bf16.gmra.mxu0 %v339
    %v597 = vpop.f32.mrf.mxu0
    %v598 = vadd.f32 %v145, %v597
    %v599 = vpop.f32.mrf.mxu0
    %v600 = vpop.f32.mrf.mxu0
    %v601 = vadd.f32 %v145, %v600
    %v602 = vpop.f32.mrf.mxu0
    %603 = vmatprep.mubr.bf16.mxu0 %v342
    %604 = vmatmul.mubr.bf16.gmra.mxu0 %v341
    %v605 = vpop.f32.mrf.mxu0
    %v606 = vadd.f32 %v145, %v605
    %v607 = vpop.f32.mrf.mxu0
    %v608 = vpop.f32.mrf.mxu0
    %v609 = vadd.f32 %v145, %v608
    %v610 = vpop.f32.mrf.mxu0
    %611 = vmatprep.mubr.bf16.mxu0 %v344
    %612 = vmatmul.mubr.bf16.gmra.mxu0 %v343
    %v613 = vpop.f32.mrf.mxu0
    %v614 = vadd.f32 %v145, %v613
    %v615 = vpop.f32.mrf.mxu0
    %v616 = vpop.f32.mrf.mxu0
    %v617 = vadd.f32 %v145, %v616
    %v618 = vpop.f32.mrf.mxu0
    %619 = vmatprep.mubr.bf16.mxu0 %v346
    %620 = vmatmul.mubr.bf16.gmra.mxu0 %v345
    %v621 = vpop.f32.mrf.mxu0
    %v622 = vadd.f32 %v145, %v621
    %v623 = vpop.f32.mrf.mxu0
    %v624 = vpop.f32.mrf.mxu0
    %v625 = vadd.f32 %v145, %v624
    %v626 = vpop.f32.mrf.mxu0
    %627 = vmatprep.mubr.bf16.mxu0 %v348
    %628 = vmatmul.mubr.bf16.gmra.mxu0 %v347
    %v629 = vpop.f32.mrf.mxu0
    %v630 = vadd.f32 %v145, %v629
    %v631 = vpop.f32.mrf.mxu0
    %v632 = vpop.f32.mrf.mxu0
    %v633 = vadd.f32 %v145, %v632
    %v634 = vpop.f32.mrf.mxu0
    %635 = vmatprep.mubr.bf16.mxu0 %v350
    %636 = vmatmul.mubr.bf16.gmra.mxu0 %v349
    %v637 = vpop.f32.mrf.mxu0
    %v638 = vadd.f32 %v145, %v637
    %v639 = vpop.f32.mrf.mxu0
    %v640 = vpop.f32.mrf.mxu0
    %v641 = vadd.f32 %v145, %v640
    %v642 = vpop.f32.mrf.mxu0
    %643 = vmatprep.mubr.bf16.mxu0 %v352
    %644 = vmatmul.mubr.bf16.gmra.mxu0 %v351
    %v645 = vpop.f32.mrf.mxu0
    %v646 = vadd.f32 %v145, %v645
    %v647 = vpop.f32.mrf.mxu0
    %v648 = vpop.f32.mrf.mxu0
    %v649 = vadd.f32 %v145, %v648
    %v650 = vpop.f32.mrf.mxu0
    %651 = vmatprep.mubr.bf16.mxu0 %v354
    %652 = vmatmul.mubr.bf16.gmra.mxu0 %v353
    %v653 = vpop.f32.mrf.mxu0
    %v654 = vadd.f32 %v145, %v653
    %v655 = vpop.f32.mrf.mxu0
    %v656 = vpop.f32.mrf.mxu0
    %v657 = vadd.f32 %v145, %v656
    %v658 = vpop.f32.mrf.mxu0
    %659 = vmatprep.mubr.bf16.mxu0 %v356
    %660 = vmatmul.mubr.bf16.gmra.mxu0 %v355
    %v661 = vpop.f32.mrf.mxu0
    %v662 = vadd.f32 %v145, %v661
    %v663 = vpop.f32.mrf.mxu0
    %v664 = vpop.f32.mrf.mxu0
    %v665 = vadd.f32 %v145, %v664
    %v666 = vpop.f32.mrf.mxu0
    %667 = vmatprep.mubr.bf16.mxu0 %v358
    %668 = vmatmul.mubr.bf16.gmra.mxu0 %v357
    %v669 = vpop.f32.mrf.mxu0
    %v670 = vadd.f32 %v145, %v669
    %v671 = vpop.f32.mrf.mxu0
    %v672 = vpop.f32.mrf.mxu0
    %v673 = vadd.f32 %v145, %v672
    %v674 = vpop.f32.mrf.mxu0
    %675 = vmatprep.mubr.bf16.mxu0 %v360
    %676 = vmatmul.mubr.bf16.gmra.mxu0 %v359
    %v677 = vpop.f32.mrf.mxu0
    %v678 = vadd.f32 %v145, %v677
    %v679 = vpop.f32.mrf.mxu0
    %v680 = vpop.f32.mrf.mxu0
    %v681 = vadd.f32 %v145, %v680
    %v682 = vpop.f32.mrf.mxu0
    %683 = vmatprep.mubr.bf16.mxu0 %v362
    %684 = vmatmul.mubr.bf16.gmra.mxu0 %v361
    %v685 = vpop.f32.mrf.mxu0
    %v686 = vadd.f32 %v145, %v685
    %v687 = vpop.f32.mrf.mxu0
    %v688 = vpop.f32.mrf.mxu0
    %v689 = vadd.f32 %v145, %v688
    %v690 = vpop.f32.mrf.mxu0
    %691 = vmatprep.mubr.bf16.mxu0 %v364
    %692 = vmatmul.mubr.bf16.gmra.mxu0 %v363
    %v693 = vpop.f32.mrf.mxu0
    %v694 = vadd.f32 %v145, %v693
    %v695 = vpop.f32.mrf.mxu0
    %v696 = vpop.f32.mrf.mxu0
    %v697 = vadd.f32 %v145, %v696
    %v698 = vpop.f32.mrf.mxu0
    %699 = vmatprep.mubr.bf16.mxu0 %v366
    %700 = vmatmul.mubr.bf16.gmra.mxu0 %v365
    %v701 = vpop.f32.mrf.mxu0
    %v702 = vadd.f32 %v145, %v701
    %v703 = vpop.f32.mrf.mxu0
    %v704 = vpop.f32.mrf.mxu0
    %v705 = vadd.f32 %v145, %v704
    %v706 = vpop.f32.mrf.mxu0
    %707 = vmatprep.mubr.bf16.mxu0 %v368
    %708 = vmatmul.mubr.bf16.gmra.mxu0 %v367
    %v709 = vpop.f32.mrf.mxu0
    %v710 = vadd.f32 %v145, %v709
    %v711 = vpop.f32.mrf.mxu0
    %v712 = vpop.f32.mrf.mxu0
    %v713 = vadd.f32 %v145, %v712
    %v714 = vpop.f32.mrf.mxu0
    %715 = vmatprep.mubr.bf16.mxu0 %v370
    %716 = vmatmul.mubr.bf16.gmra.mxu0 %v369
    %v717 = vpop.f32.mrf.mxu0
    %v718 = vadd.f32 %v145, %v717
    %v719 = vpop.f32.mrf.mxu0
    %v720 = vpop.f32.mrf.mxu0
    %v721 = vadd.f32 %v145, %v720
    %v722 = vpop.f32.mrf.mxu0
    %723 = vmatprep.mubr.bf16.mxu0 %v372
    %724 = vmatmul.mubr.bf16.gmra.mxu0 %v371
    %v725 = vpop.f32.mrf.mxu0
    %v726 = vadd.f32 %v145, %v725
    %v727 = vpop.f32.mrf.mxu0
    %v728 = vpop.f32.mrf.mxu0
    %v729 = vadd.f32 %v145, %v728
    %v730 = vpop.f32.mrf.mxu0
    %731 = vmatprep.mubr.bf16.mxu0 %v374
    %732 = vmatmul.mubr.bf16.gmra.mxu0 %v373
    %v733 = vpop.f32.mrf.mxu0
    %v734 = vadd.f32 %v145, %v733
    %v735 = vpop.f32.mrf.mxu0
    %v736 = vpop.f32.mrf.mxu0
    %v737 = vadd.f32 %v145, %v736
    %v738 = vpop.f32.mrf.mxu0
    %739 = vmatprep.mubr.bf16.mxu0 %v376
    %740 = vmatmul.mubr.bf16.gmra.mxu0 %v375
    %v741 = vpop.f32.mrf.mxu0
    %v742 = vadd.f32 %v145, %v741
    %v743 = vpop.f32.mrf.mxu0
    %v744 = vpop.f32.mrf.mxu0
    %v745 = vadd.f32 %v145, %v744
    %v746 = vpop.f32.mrf.mxu0
    %747 = vmatprep.mubr.bf16.mxu0 %v378
    %748 = vmatmul.mubr.bf16.gmra.mxu0 %v377
    %v749 = vpop.f32.mrf.mxu0
    %v750 = vadd.f32 %v145, %v749
    %v751 = vpop.f32.mrf.mxu0
    %v752 = vpop.f32.mrf.mxu0
    %v753 = vadd.f32 %v145, %v752
    %v754 = vpop.f32.mrf.mxu0
    %755 = vmatprep.mubr.bf16.mxu0 %v380
    %756 = vmatmul.mubr.bf16.gmra.mxu0 %v379
    %v757 = vpop.f32.mrf.mxu0
    %v758 = vadd.f32 %v145, %v757
    %v759 = vpop.f32.mrf.mxu0
    %v760 = vpop.f32.mrf.mxu0
    %v761 = vadd.f32 %v145, %v760
    %v762 = vpop.f32.mrf.mxu0
    %763 = vmatprep.mubr.bf16.mxu0 %v382
    %764 = vmatmul.mubr.bf16.gmra.mxu0 %v381
    %v765 = vpop.f32.mrf.mxu0
    %v766 = vadd.f32 %v145, %v765
    %v767 = vpop.f32.mrf.mxu0
    %v768 = vpop.f32.mrf.mxu0
    %v769 = vadd.f32 %v145, %v768
    %v770 = vpop.f32.mrf.mxu0
    %771 = vmatprep.mubr.bf16.mxu0 %v384
    %772 = vmatmul.mubr.bf16.gmra.mxu0 %v383
    %v773 = vpop.f32.mrf.mxu0
    %v774 = vadd.f32 %v145, %v773
    %v775 = vpop.f32.mrf.mxu0
    %v776 = vpop.f32.mrf.mxu0
    %v777 = vadd.f32 %v145, %v776
    %v778 = vpop.f32.mrf.mxu0
    %779 = vmatprep.mubr.bf16.mxu0 %v386
    %780 = vmatmul.mubr.bf16.gmra.mxu0 %v385
    %v781 = vpop.f32.mrf.mxu0
    %v782 = vadd.f32 %v145, %v781
    %v783 = vpop.f32.mrf.mxu0
    %v784 = vpop.f32.mrf.mxu0
    %v785 = vadd.f32 %v145, %v784
    %v786 = vpop.f32.mrf.mxu0
    %787 = vmatprep.mubr.bf16.mxu0 %v388
    %788 = vmatmul.mubr.bf16.gmra.mxu0 %v387
    %v789 = vpop.f32.mrf.mxu0
    %v790 = vadd.f32 %v145, %v789
    %v791 = vpop.f32.mrf.mxu0
    %v792 = vpop.f32.mrf.mxu0
    %v793 = vadd.f32 %v145, %v792
    %v794 = vpop.f32.mrf.mxu0
    %795 = vmatprep.mubr.bf16.mxu0 %v390
    %796 = vmatmul.mubr.bf16.gmra.mxu0 %v389
    %v797 = vpop.f32.mrf.mxu0
    %v798 = vadd.f32 %v145, %v797
    %v799 = vpop.f32.mrf.mxu0
    %v800 = vpop.f32.mrf.mxu0
    %v801 = vadd.f32 %v145, %v800
    %v802 = vpop.f32.mrf.mxu0
    %803 = vmatprep.mubr.bf16.mxu0 %v392
    %804 = vmatmul.mubr.bf16.gmra.mxu0 %v391
    %v805 = vpop.f32.mrf.mxu0
    %v806 = vadd.f32 %v145, %v805
    %v807 = vpop.f32.mrf.mxu0
    %v808 = vpop.f32.mrf.mxu0
    %v809 = vadd.f32 %v145, %v808
    %v810 = vpop.f32.mrf.mxu0
    %811 = vmatprep.mubr.bf16.mxu0 %v394
    %812 = vmatmul.mubr.bf16.gmra.mxu0 %v393
    %v813 = vpop.f32.mrf.mxu0
    %v814 = vadd.f32 %v145, %v813
    %v815 = vpop.f32.mrf.mxu0
    %v816 = vpop.f32.mrf.mxu0
    %v817 = vadd.f32 %v145, %v816
    %v818 = vpop.f32.mrf.mxu0
    %819 = vmatprep.mubr.bf16.mxu0 %v396
    %820 = vmatmul.mubr.bf16.gmra.mxu0 %v395
    %v821 = vpop.f32.mrf.mxu0
    %v822 = vadd.f32 %v145, %v821
    %v823 = vpop.f32.mrf.mxu0
    %v824 = vpop.f32.mrf.mxu0
    %v825 = vadd.f32 %v145, %v824
    %v826 = vpop.f32.mrf.mxu0
    %827 = vmatprep.mubr.bf16.mxu0 %v398
    %828 = vmatmul.mubr.bf16.gmra.mxu0 %v397
    %v829 = vpop.f32.mrf.mxu0
    %v830 = vadd.f32 %v145, %v829
    %v831 = vpop.f32.mrf.mxu0
    %v832 = vpop.f32.mrf.mxu0
    %v833 = vadd.f32 %v145, %v832
    %v834 = vpop.f32.mrf.mxu0
    %835 = vmatprep.mubr.bf16.mxu0 %v400
    %836 = vmatmul.mubr.bf16.gmra.mxu0 %v399
    %v837 = vpop.f32.mrf.mxu0
    %v838 = vadd.f32 %v145, %v837
    %v839 = vpop.f32.mrf.mxu0
    %v840 = vpop.f32.mrf.mxu0
    %v841 = vadd.f32 %v145, %v840
    %v842 = vpop.f32.mrf.mxu0
    %843 = vmatprep.mubr.bf16.mxu0 %v402
    %844 = vmatmul.mubr.bf16.gmra.mxu0 %v401
    %v845 = vpop.f32.mrf.mxu0
    %v846 = vadd.f32 %v145, %v845
    %v847 = vpop.f32.mrf.mxu0
    %v848 = vpop.f32.mrf.mxu0
    %v849 = vadd.f32 %v145, %v848
    %v850 = vpop.f32.mrf.mxu0
    %851 = vdwg.mxu0
    %v852 = vmax.f32 %v598, 0.0
    %v853 = vmax.f32 %v601, 0.0
    %v854 = vmax.f32 %v606, 0.0
    %v855 = vmax.f32 %v609, 0.0
    %v856 = vmax.f32 %v614, 0.0
    %v857 = vmax.f32 %v617, 0.0
    %v858 = vmax.f32 %v622, 0.0
    %v859 = vmax.f32 %v625, 0.0
    %v860 = vmax.f32 %v630, 0.0
    %v861 = vmax.f32 %v633, 0.0
    %v862 = vmax.f32 %v638, 0.0
    %v863 = vmax.f32 %v641, 0.0
    %v864 = vmax.f32 %v646, 0.0
    %v865 = vmax.f32 %v649, 0.0
    %v866 = vmax.f32 %v654, 0.0
    %v867 = vmax.f32 %v657, 0.0
    %v868 = vmax.f32 %v662, 0.0
    %v869 = vmax.f32 %v665, 0.0
    %v870 = vmax.f32 %v670, 0.0
    %v871 = vmax.f32 %v673, 0.0
    %v872 = vmax.f32 %v678, 0.0
    %v873 = vmax.f32 %v681, 0.0
    %v874 = vmax.f32 %v686, 0.0
    %v875 = vmax.f32 %v689, 0.0
    %v876 = vmax.f32 %v694, 0.0
    %v877 = vmax.f32 %v697, 0.0
    %v878 = vmax.f32 %v702, 0.0
    %v879 = vmax.f32 %v705, 0.0
    %v880 = vmax.f32 %v710, 0.0
    %v881 = vmax.f32 %v713, 0.0
    %v882 = vmax.f32 %v718, 0.0
    %v883 = vmax.f32 %v721, 0.0
    %v884 = vmax.f32 %v726, 0.0
    %v885 = vmax.f32 %v729, 0.0
    %v886 = vmax.f32 %v734, 0.0
    %v887 = vmax.f32 %v737, 0.0
    %v888 = vmax.f32 %v742, 0.0
    %v889 = vmax.f32 %v745, 0.0
    %v890 = vmax.f32 %v750, 0.0
    %v891 = vmax.f32 %v753, 0.0
    %v892 = vmax.f32 %v758, 0.0
    %v893 = vmax.f32 %v761, 0.0
    %v894 = vmax.f32 %v766, 0.0
    %v895 = vmax.f32 %v769, 0.0
    %v896 = vmax.f32 %v774, 0.0
    %v897 = vmax.f32 %v777, 0.0
    %v898 = vmax.f32 %v782, 0.0
    %v899 = vmax.f32 %v785, 0.0
    %v900 = vmax.f32 %v790, 0.0
    %v901 = vmax.f32 %v793, 0.0
    %v902 = vmax.f32 %v798, 0.0
    %v903 = vmax.f32 %v801, 0.0
    %v904 = vmax.f32 %v806, 0.0
    %v905 = vmax.f32 %v809, 0.0
    %v906 = vmax.f32 %v814, 0.0
    %v907 = vmax.f32 %v817, 0.0
    %v908 = vmax.f32 %v822, 0.0
    %v909 = vmax.f32 %v825, 0.0
    %v910 = vmax.f32 %v830, 0.0
    %v911 = vmax.f32 %v833, 0.0
    %v912 = vmax.f32 %v838, 0.0
    %v913 = vmax.f32 %v841, 0.0
    %v914 = vmax.f32 %v846, 0.0
    %v915 = vmax.f32 %v849, 0.0
    %v916 = vpack.c.bf16 %v853, %v852
    %v917 = vpack.c.bf16 %v855, %v854
    %v918 = vpack.c.bf16 %v857, %v856
    %v919 = vpack.c.bf16 %v859, %v858
    %v920 = vpack.c.bf16 %v861, %v860
    %v921 = vpack.c.bf16 %v863, %v862
    %v922 = vpack.c.bf16 %v865, %v864
    %v923 = vpack.c.bf16 %v867, %v866
    %v924 = vpack.c.bf16 %v869, %v868
    %v925 = vpack.c.bf16 %v871, %v870
    %v926 = vpack.c.bf16 %v873, %v872
    %v927 = vpack.c.bf16 %v875, %v874
    %v928 = vpack.c.bf16 %v877, %v876
    %v929 = vpack.c.bf16 %v879, %v878
    %v930 = vpack.c.bf16 %v881, %v880
    %v931 = vpack.c.bf16 %v883, %v882
    %v932 = vpack.c.bf16 %v885, %v884
    %v933 = vpack.c.bf16 %v887, %v886
    %v934 = vpack.c.bf16 %v889, %v888
    %v935 = vpack.c.bf16 %v891, %v890
    %v936 = vpack.c.bf16 %v893, %v892
    %v937 = vpack.c.bf16 %v895, %v894
    %v938 = vpack.c.bf16 %v897, %v896
    %v939 = vpack.c.bf16 %v899, %v898
    %v940 = vpack.c.bf16 %v901, %v900
    %v941 = vpack.c.bf16 %v903, %v902
    %v942 = vpack.c.bf16 %v905, %v904
    %v943 = vpack.c.bf16 %v907, %v906
    %v944 = vpack.c.bf16 %v909, %v908
    %v945 = vpack.c.bf16 %v911, %v910
    %v946 = vpack.c.bf16 %v913, %v912
    %v947 = vpack.c.bf16 %v915, %v914
    %v980 = vunpack.c.l.b16 %v916
    %v981 = vunpack.c.h.b16 %v916
    %v982 = vunpack.c.l.b16 %v917
    %v983 = vunpack.c.h.b16 %v917
    %v984 = vunpack.c.l.b16 %v918
    %v985 = vunpack.c.h.b16 %v918
    %v986 = vunpack.c.l.b16 %v919
    %v987 = vunpack.c.h.b16 %v919
    %v988 = vunpack.c.l.b16 %v920
    %v989 = vunpack.c.h.b16 %v920
    %v990 = vunpack.c.l.b16 %v921
    %v991 = vunpack.c.h.b16 %v921
    %v992 = vunpack.c.l.b16 %v922
    %v993 = vunpack.c.h.b16 %v922
    %v994 = vunpack.c.l.b16 %v923
    %v995 = vunpack.c.h.b16 %v923
    %v996 = vunpack.c.l.b16 %v924
    %v997 = vunpack.c.h.b16 %v924
    %v998 = vunpack.c.l.b16 %v925
    %v999 = vunpack.c.h.b16 %v925
    %v1000 = vunpack.c.l.b16 %v926
    %v1001 = vunpack.c.h.b16 %v926
    %v1002 = vunpack.c.l.b16 %v927
    %v1003 = vunpack.c.h.b16 %v927
    %v1004 = vunpack.c.l.b16 %v928
    %v1005 = vunpack.c.h.b16 %v928
    %v1006 = vunpack.c.l.b16 %v929
    %v1007 = vunpack.c.h.b16 %v929
    %v1008 = vunpack.c.l.b16 %v930
    %v1009 = vunpack.c.h.b16 %v930
    %v1010 = vunpack.c.l.b16 %v931
    %v1011 = vunpack.c.h.b16 %v931
    %v1012 = vunpack.c.l.b16 %v932
    %v1013 = vunpack.c.h.b16 %v932
    %v1014 = vunpack.c.l.b16 %v933
    %v1015 = vunpack.c.h.b16 %v933
    %v1016 = vunpack.c.l.b16 %v934
    %v1017 = vunpack.c.h.b16 %v934
    %v1018 = vunpack.c.l.b16 %v935
    %v1019 = vunpack.c.h.b16 %v935
    %v1020 = vunpack.c.l.b16 %v936
    %v1021 = vunpack.c.h.b16 %v936
    %v1022 = vunpack.c.l.b16 %v937
    %v1023 = vunpack.c.h.b16 %v937
    %v1024 = vunpack.c.l.b16 %v938
    %v1025 = vunpack.c.h.b16 %v938
    %v1026 = vunpack.c.l.b16 %v939
    %v1027 = vunpack.c.h.b16 %v939
    %v1028 = vunpack.c.l.b16 %v940
    %v1029 = vunpack.c.h.b16 %v940
    %v1030 = vunpack.c.l.b16 %v941
    %v1031 = vunpack.c.h.b16 %v941
    %v1032 = vunpack.c.l.b16 %v942
    %v1033 = vunpack.c.h.b16 %v942
    %v1034 = vunpack.c.l.b16 %v943
    %v1035 = vunpack.c.h.b16 %v943
    %v1036 = vunpack.c.l.b16 %v944
    %v1037 = vunpack.c.h.b16 %v944
    %v1038 = vunpack.c.l.b16 %v945
    %v1039 = vunpack.c.h.b16 %v945
    %v1040 = vunpack.c.l.b16 %v946
    %v1041 = vunpack.c.h.b16 %v946
    %v1042 = vunpack.c.l.b16 %v947
    %v1043 = vunpack.c.h.b16 %v947
    %v1044 = vpack.c.b16 %v980, %v980
    %v1045 = vpack.c.b16 %v981, %v981
    %v1046 = vpack.c.b16 %v982, %v982
    %v1047 = vpack.c.b16 %v983, %v983
    %v1048 = vpack.c.b16 %v984, %v984
    %v1049 = vpack.c.b16 %v985, %v985
    %v1050 = vpack.c.b16 %v986, %v986
    %v1051 = vpack.c.b16 %v987, %v987
    %v1052 = vpack.c.b16 %v988, %v988
    %v1053 = vpack.c.b16 %v989, %v989
    %v1054 = vpack.c.b16 %v990, %v990
    %v1055 = vpack.c.b16 %v991, %v991
    %v1056 = vpack.c.b16 %v992, %v992
    %v1057 = vpack.c.b16 %v993, %v993
    %v1058 = vpack.c.b16 %v994, %v994
    %v1059 = vpack.c.b16 %v995, %v995
    %v1060 = vpack.c.b16 %v996, %v996
    %v1061 = vpack.c.b16 %v997, %v997
    %v1062 = vpack.c.b16 %v998, %v998
    %v1063 = vpack.c.b16 %v999, %v999
    %v1064 = vpack.c.b16 %v1000, %v1000
    %v1065 = vpack.c.b16 %v1001, %v1001
    %v1066 = vpack.c.b16 %v1002, %v1002
    %v1067 = vpack.c.b16 %v1003, %v1003
    %v1068 = vpack.c.b16 %v1004, %v1004
    %v1069 = vpack.c.b16 %v1005, %v1005
    %v1070 = vpack.c.b16 %v1006, %v1006
    %v1071 = vpack.c.b16 %v1007, %v1007
    %v1072 = vpack.c.b16 %v1008, %v1008
    %v1073 = vpack.c.b16 %v1009, %v1009
    %v1074 = vpack.c.b16 %v1010, %v1010
    %v1075 = vpack.c.b16 %v1011, %v1011
    %v1076 = vpack.c.b16 %v1012, %v1012
    %v1077 = vpack.c.b16 %v1013, %v1013
    %v1078 = vpack.c.b16 %v1014, %v1014
    %v1079 = vpack.c.b16 %v1015, %v1015
    %v1080 = vpack.c.b16 %v1016, %v1016
    %v1081 = vpack.c.b16 %v1017, %v1017
    %v1082 = vpack.c.b16 %v1018, %v1018
    %v1083 = vpack.c.b16 %v1019, %v1019
    %v1084 = vpack.c.b16 %v1020, %v1020
    %v1085 = vpack.c.b16 %v1021, %v1021
    %v1086 = vpack.c.b16 %v1022, %v1022
    %v1087 = vpack.c.b16 %v1023, %v1023
    %v1088 = vpack.c.b16 %v1024, %v1024
    %v1089 = vpack.c.b16 %v1025, %v1025
    %v1090 = vpack.c.b16 %v1026, %v1026
    %v1091 = vpack.c.b16 %v1027, %v1027
    %v1092 = vpack.c.b16 %v1028, %v1028
    %v1093 = vpack.c.b16 %v1029, %v1029
    %v1094 = vpack.c.b16 %v1030, %v1030
    %v1095 = vpack.c.b16 %v1031, %v1031
    %v1096 = vpack.c.b16 %v1032, %v1032
    %v1097 = vpack.c.b16 %v1033, %v1033
    %v1098 = vpack.c.b16 %v1034, %v1034
    %v1099 = vpack.c.b16 %v1035, %v1035
    %v1100 = vpack.c.b16 %v1036, %v1036
    %v1101 = vpack.c.b16 %v1037, %v1037
    %v1102 = vpack.c.b16 %v1038, %v1038
    %v1103 = vpack.c.b16 %v1039, %v1039
    %v1104 = vpack.c.b16 %v1040, %v1040
    %v1105 = vpack.c.b16 %v1041, %v1041
    %v1106 = vpack.c.b16 %v1042, %v1042
    %v1107 = vpack.c.b16 %v1043, %v1043
    %1172 = vst [vmem:[#allocation7] sm:$0xf] %v1044
    %1173 = vst [vmem:[#allocation7 + $0x4] sm:$0xf] %v1045
    %1174 = vst [vmem:[#allocation7 + $0x8] sm:$0xf] %v1046
    %1175 = vst [vmem:[#allocation7 + $0xc] sm:$0xf] %v1047
    %1176 = vst [vmem:[#allocation7 + $0x10] sm:$0xf] %v1048
    %1177 = vst [vmem:[#allocation7 + $0x14] sm:$0xf] %v1049
    %1178 = vst [vmem:[#allocation7 + $0x18] sm:$0xf] %v1050
    %1179 = vst [vmem:[#allocation7 + $0x1c] sm:$0xf] %v1051
    %1180 = vst [vmem:[#allocation7 + $0x20] sm:$0xf] %v1052
    %1181 = vst [vmem:[#allocation7 + $0x24] sm:$0xf] %v1053
    %1182 = vst [vmem:[#allocation7 + $0x28] sm:$0xf] %v1054
    %1183 = vst [vmem:[#allocation7 + $0x2c] sm:$0xf] %v1055
    %1184 = vst [vmem:[#allocation7 + $0x30] sm:$0xf] %v1056
    %1185 = vst [vmem:[#allocation7 + $0x34] sm:$0xf] %v1057
    %1186 = vst [vmem:[#allocation7 + $0x38] sm:$0xf] %v1058
    %1187 = vst [vmem:[#allocation7 + $0x3c] sm:$0xf] %v1059
    %1188 = vst [vmem:[#allocation7 + $0x40] sm:$0xf] %v1060
    %1189 = vst [vmem:[#allocation7 + $0x44] sm:$0xf] %v1061
    %1190 = vst [vmem:[#allocation7 + $0x48] sm:$0xf] %v1062
    %1191 = vst [vmem:[#allocation7 + $0x4c] sm:$0xf] %v1063
    %1192 = vst [vmem:[#allocation7 + $0x50] sm:$0xf] %v1064
    %1193 = vst [vmem:[#allocation7 + $0x54] sm:$0xf] %v1065
    %1194 = vst [vmem:[#allocation7 + $0x58] sm:$0xf] %v1066
    %1195 = vst [vmem:[#allocation7 + $0x5c] sm:$0xf] %v1067
    %1196 = vst [vmem:[#allocation7 + $0x60] sm:$0xf] %v1068
    %1197 = vst [vmem:[#allocation7 + $0x64] sm:$0xf] %v1069
    %1198 = vst [vmem:[#allocation7 + $0x68] sm:$0xf] %v1070
    %1199 = vst [vmem:[#allocation7 + $0x6c] sm:$0xf] %v1071
    %1200 = vst [vmem:[#allocation7 + $0x70] sm:$0xf] %v1072
    %1201 = vst [vmem:[#allocation7 + $0x74] sm:$0xf] %v1073
    %1202 = vst [vmem:[#allocation7 + $0x78] sm:$0xf] %v1074
    %1203 = vst [vmem:[#allocation7 + $0x7c] sm:$0xf] %v1075
    %1204 = vst [vmem:[#allocation7 + $0x80] sm:$0xf] %v1076
    %1205 = vst [vmem:[#allocation7 + $0x84] sm:$0xf] %v1077
    %1206 = vst [vmem:[#allocation7 + $0x88] sm:$0xf] %v1078
    %1207 = vst [vmem:[#allocation7 + $0x8c] sm:$0xf] %v1079
    %1208 = vst [vmem:[#allocation7 + $0x90] sm:$0xf] %v1080
    %1209 = vst [vmem:[#allocation7 + $0x94] sm:$0xf] %v1081
    %1210 = vst [vmem:[#allocation7 + $0x98] sm:$0xf] %v1082
    %1211 = vst [vmem:[#allocation7 + $0x9c] sm:$0xf] %v1083
    %1212 = vst [vmem:[#allocation7 + $0xa0] sm:$0xf] %v1084
    %1213 = vst [vmem:[#allocation7 + $0xa4] sm:$0xf] %v1085
    %1214 = vst [vmem:[#allocation7 + $0xa8] sm:$0xf] %v1086
    %1215 = vst [vmem:[#allocation7 + $0xac] sm:$0xf] %v1087
    %1216 = vst [vmem:[#allocation7 + $0xb0] sm:$0xf] %v1088
    %1217 = vst [vmem:[#allocation7 + $0xb4] sm:$0xf] %v1089
    %1218 = vst [vmem:[#allocation7 + $0xb8] sm:$0xf] %v1090
    %1219 = vst [vmem:[#allocation7 + $0xbc] sm:$0xf] %v1091
    %1220 = vst [vmem:[#allocation7 + $0xc0] sm:$0xf] %v1092
    %1221 = vst [vmem:[#allocation7 + $0xc4] sm:$0xf] %v1093
    %1222 = vst [vmem:[#allocation7 + $0xc8] sm:$0xf] %v1094
    %1223 = vst [vmem:[#allocation7 + $0xcc] sm:$0xf] %v1095
    %1224 = vst [vmem:[#allocation7 + $0xd0] sm:$0xf] %v1096
    %1225 = vst [vmem:[#allocation7 + $0xd4] sm:$0xf] %v1097
    %1226 = vst [vmem:[#allocation7 + $0xd8] sm:$0xf] %v1098
    %1227 = vst [vmem:[#allocation7 + $0xdc] sm:$0xf] %v1099
    %1228 = vst [vmem:[#allocation7 + $0xe0] sm:$0xf] %v1100
    %1229 = vst [vmem:[#allocation7 + $0xe4] sm:$0xf] %v1101
    %1230 = vst [vmem:[#allocation7 + $0xe8] sm:$0xf] %v1102
    %1231 = vst [vmem:[#allocation7 + $0xec] sm:$0xf] %v1103
    %1232 = vst [vmem:[#allocation7 + $0xf0] sm:$0xf] %v1104
    %1233 = vst [vmem:[#allocation7 + $0xf4] sm:$0xf] %v1105
    %1234 = vst [vmem:[#allocation7 + $0xf8] sm:$0xf] %v1106
    %1235 = vst [vmem:[#allocation7 + $0xfc] sm:$0xf] %v1107
    // Predicated region
    $region22: #{tpu_custom_call.1} parent=1 // pred_check
      _
    $region23: #{tpu_custom_call.1} parent=1 // pred_check_branch
      %1237 = sbr.rel (0) target = $region25
    $region24: #{tpu_custom_call.1} parent=1 // pred_region
      %s1239 = ssub.s32 4096, 4096
      %1240 = vsyncadd [#allocation4], %s1239
      %s1241 = sshll.u32 [#allocation7], 4
      %s1242 = int_to_ptr.vmem [resolvable:$true] %s1241
      %1247 = dma.vmem_to_hbm [thread:$0]  %s1242, 4096, %s3, [#allocation4], 64, 64, 4
    $region25: #{tpu_custom_call.1} parent=1 // pred_fallthru
      _
    // Predicated region
    $region26: #{tpu_custom_call.1} parent=1 // pred_check
      _
    $region27: #{tpu_custom_call.1} parent=1 // pred_check_branch
      %1249 = sbr.rel (0) target = $region29
    $region28: #{tpu_custom_call.1} parent=1 // pred_region
      %1250 = dma.done [#allocation4], 4096
    $region29: #{tpu_custom_call.1} parent=1 // pred_fallthru
      _
    %1251 = vsyncpa [#allocation3], 1
    %1252 = vsyncpa [#allocation6], 1
    %1253 = vsyncpa [#allocation4], 1

</llo_original>
